<compile_context>
chip_gen: v6e
topology: v6e:2x2x1
jax: 0.10.0
libtpu: 0.0.40
codegen_flags: <defaults>
</compile_context>

<pallas_src>
import functools

import jax
import jax.numpy as jnp
from jax.experimental import pallas as pl
from jax.experimental.pallas import tpu as pltpu


def apcp_kernel(x_ref, gapw_ref, y_ref, scale_ref, sum_ref, acc_ref, *, eps):
    p = pl.program_id(0)          # 0: global-sum pass, 1: main pass
    t = pl.program_id(1)          # row-tile index
    nt = pl.num_programs(1)
    hw = x_ref.shape[-1]

    xf = x_ref[...].astype(jnp.float32)               # (TR, HW)
    mean_sp = jnp.mean(xf, axis=-1, keepdims=True)    # per-(n,c) spatial mean
    d = xf - mean_sp
    sq = d * d                                        # (x - mean)^2

    @pl.when(p == 0)
    def _global_sum_pass():
        @pl.when(t == 0)
        def _():
            sum_ref[...] = jnp.zeros_like(sum_ref)
        sum_ref[...] += jnp.sum(sq)

    @pl.when(p == 1)
    def _main_pass():
        # e_ss = sq / (sum(sq)/(HW-1) + eps); hoist the divide to one scalar.
        total = jnp.sum(sum_ref[...])                           # scalar
        inv_denom = 1.0 / (total / float(hw - 1) + eps)
        y = xf * jax.nn.sigmoid(sq * inv_denom)
        y_ref[...] = y.astype(y_ref.dtype)

        # GAP: per-channel batch mean of y.  gapw is (C, TR) = eye(C)/N tiled,
        # so one small full-precision MXU matmul reduces the tile's batches.
        @pl.when(t == 0)
        def _():
            acc_ref[...] = jnp.zeros_like(acc_ref)
        acc_ref[...] += jnp.dot(gapw_ref[...], y,
                                preferred_element_type=jnp.float32,
                                precision=jax.lax.Precision.HIGHEST)

        @pl.when(t == nt - 1)
        def _finalize():
            x_aver = acc_ref[...]                                         # (C, HW)
            val = jnp.sqrt(
                jnp.sum(x_aver * x_aver, axis=-1, keepdims=True) + eps)   # (C, 1)
            val_hat = val * jax.lax.rsqrt(
                jnp.mean(val * val, axis=0, keepdims=True) + eps)         # (C, 1)
            scale = jax.nn.sigmoid(val_hat)                               # (C, 1)
            scale_ref[...] = jnp.broadcast_to(
                scale, scale_ref.shape).astype(scale_ref.dtype)


def _pick_batches_per_tile(N, C, hw, itemsize, target_bytes):
    """Largest bpt s.t. bpt | N, the tile is sublane-legal, and it fits the budget."""
    divisors = [d for d in range(1, N + 1) if N % d == 0]
    legal = [d for d in divisors if ((d * C) % 8 == 0) or (d == N)]
    fitting = [d for d in legal if d * C * hw * itemsize <= target_bytes]
    if fitting:
        return max(fitting)
    return min(legal)             # fall back to the smallest sublane-legal tile


def apcp_forward(x, *, eps=1e-5, tile_target_bytes=2 * 1024 * 1024):
    """x: (N, C, H, W).  Returns (y: (N, C, H, W), scale: (C,))."""
    N, C, H, W = x.shape
    hw = H * W
    R = N * C
    xr = x.reshape(R, hw)

    bpt = _pick_batches_per_tile(N, C, hw, 4, tile_target_bytes)  # budget in f32
    TR = bpt * C                  # rows per tile
    nt = N // bpt                 # number of row tiles

    # (C, TR) GAP weights: eye(C)/N tiled along the tile's batches.
    gap_w = jnp.tile(jnp.eye(C, dtype=jnp.float32) / N, (1, bpt))

    y, scale_buf = pl.pallas_call(
        functools.partial(apcp_kernel, eps=eps),
        out_shape=(
            jax.ShapeDtypeStruct((R, hw), x.dtype),
            jax.ShapeDtypeStruct((C, 128), jnp.float32),
        ),
        grid=(2, nt),
        in_specs=[
            pl.BlockSpec((TR, hw), lambda p, t: (t, 0)),
            pl.BlockSpec((C, TR), lambda p, t: (0, 0)),
        ],
        out_specs=(
            # Pass 0 never writes y; pinning its block index to 0 keeps the
            # output buffer resident (no garbage writeback) until pass 1 fills it.
            pl.BlockSpec((TR, hw), lambda p, t: (t * p, 0)),
            pl.BlockSpec((C, 128), lambda p, t: (0, 0)),
        ),
        scratch_shapes=[
            pltpu.VMEM((1, 1), jnp.float32),    # global sum of (x - mean)^2
            pltpu.VMEM((C, hw), jnp.float32),   # per-channel batch mean of y
        ],
        compiler_params=pltpu.CompilerParams(
            dimension_semantics=("arbitrary", "arbitrary"),
            vmem_limit_bytes=32 * 1024 * 1024,
        ),
    )(xr, gap_w)

    return y.reshape(N, C, H, W), scale_buf[:, 0].astype(x.dtype)


def apcp_reference(x, *, eps=1e-5):
    # Pure-JAX reference mirroring the (intended) PyTorch forward.
    N, C, H, W = x.shape
    mean_sp = jnp.mean(x, axis=(2, 3), keepdims=True)
    x_hat = (x - mean_sp) ** 2
    e_ss = x_hat / (jnp.sum(x_hat) / (H * W - 1) + eps)
    y = x * jax.nn.sigmoid(e_ss)
    x_aver = jnp.mean(y, axis=0, keepdims=True)
    val = jnp.sqrt(jnp.sum(x_aver ** 2, axis=(2, 3), keepdims=True) + eps)
    val_hat = val / jnp.sqrt(jnp.mean(val ** 2, axis=1, keepdims=True) + eps)
    scale = jax.nn.sigmoid(jnp.squeeze(val_hat))
    return y, scale


if __name__ == "__main__":
    key = jax.random.PRNGKey(0)
    N, C, H, W = 2, 4, 16, 16
    x = jax.random.normal(key, (N, C, H, W), dtype=jnp.float32)

    y, scale = apcp_forward(x)
    jax.block_until_ready((y, scale))

    y_ref, scale_ref = apcp_reference(x)
    assert y.shape == (N, C, H, W) and scale.shape == (C,)
    assert jnp.allclose(y, y_ref, rtol=1e-5, atol=1e-5)
    assert jnp.allclose(scale, scale_ref, rtol=1e-5, atol=1e-5)

    print("KERNEL_OK")
</pallas_src>

<mosaic_0001>
module attributes {stable_mosaic.version = 11 : i64} {
  func.func @apcp_kernel(%arg0: i32, %arg1: i32, %arg2: memref<8x256xf32, #tpu.memory_space<vmem>>, %arg3: memref<4x8xf32, #tpu.memory_space<vmem>>, %arg4: memref<8x256xf32, #tpu.memory_space<vmem>>, %arg5: memref<4x128xf32, #tpu.memory_space<vmem>>, %arg6: memref<1x1xf32, #tpu.memory_space<vmem>>, %arg7: memref<4x256xf32, #tpu.memory_space<vmem>>) attributes {dimension_semantics = [#tpu.dimension_semantics<arbitrary>, #tpu.dimension_semantics<arbitrary>], iteration_bounds = array<i64: 2, 1>, scalar_prefetch = 0 : i64, scratch_operands = 2 : i64, tpu.core_type = #tpu.core_type<tc>, window_params = [{transform_indices = @transform_0, window_bounds = array<i64: 8, 256>}, {pipeline_mode = #tpu.pipeline_mode<synchronous>, transform_indices = @transform_1, window_bounds = array<i64: 4, 8>}, {transform_indices = @transform_2, window_bounds = array<i64: 8, 256>}, {pipeline_mode = #tpu.pipeline_mode<synchronous>, transform_indices = @transform_3, window_bounds = array<i64: 4, 128>}]} {
    %c0 = arith.constant 0 : index
    %c0_0 = arith.constant 0 : index
    %0 = vector.load %arg2[%c0, %c0_0] : memref<8x256xf32, #tpu.memory_space<vmem>>, vector<8x256xf32>
    %cst = arith.constant dense<0.000000e+00> : vector<8xf32>
    %1 = vector.multi_reduction <add>, %0, %cst [1] : vector<8x256xf32> to vector<8xf32>
    %2 = vector.shape_cast %1 : vector<8xf32> to vector<8x1xf32>
    %cst_1 = arith.constant 2.560000e+02 : f32
    %3 = vector.broadcast %cst_1 : f32 to vector<8x1xf32>
    %4 = arith.divf %2, %3 : vector<8x1xf32>
    %5 = vector.broadcast %4 : vector<8x1xf32> to vector<8x256xf32>
    %6 = arith.subf %0, %5 : vector<8x256xf32>
    %7 = arith.mulf %6, %6 : vector<8x256xf32>
    %c0_i32 = arith.constant 0 : i32
    %8 = arith.cmpi eq, %arg0, %c0_i32 : i32
    %9 = arith.extui %8 : i1 to i32
    %c0_i32_2 = arith.constant 0 : i32
    %10 = arith.cmpi ne, %9, %c0_i32_2 : i32
    scf.if %10 {
      %c0_i32_4 = arith.constant 0 : i32
      %14 = arith.cmpi eq, %arg1, %c0_i32_4 : i32
      %15 = arith.extui %14 : i1 to i32
      %c0_i32_5 = arith.constant 0 : i32
      %16 = arith.cmpi ne, %15, %c0_i32_5 : i32
      scf.if %16 {
        %cst_11 = arith.constant 0.000000e+00 : f32
        %25 = vector.broadcast %cst_11 : f32 to vector<1x1xf32>
        %c0_12 = arith.constant 0 : index
        %c0_13 = arith.constant 0 : index
        %26 = vector.load %arg6[%c0_12, %c0_13] : memref<1x1xf32, #tpu.memory_space<vmem>>, vector<1x1xf32>
        tpu.vector_store %arg6[%c0_12, %c0_13], %25 {strides = array<i32>} : memref<1x1xf32, #tpu.memory_space<vmem>>, vector<1x1xf32>,
      } else {
      }
      %c0_6 = arith.constant 0 : index
      %c0_7 = arith.constant 0 : index
      %17 = vector.load %arg6[%c0_6, %c0_7] : memref<1x1xf32, #tpu.memory_space<vmem>>, vector<1x1xf32>
      %18 = vector.shape_cast %7 : vector<8x256xf32> to vector<1x8x256xf32>
      %cst_8 = arith.constant dense<0.000000e+00> : vector<1xf32>
      %19 = vector.multi_reduction <add>, %18, %cst_8 [1, 2] : vector<1x8x256xf32> to vector<1xf32>
      %20 = vector.shape_cast %19 : vector<1xf32> to vector<1x1x1xf32>
      %21 = vector.extract %20[0, 0, 0] : f32 from vector<1x1x1xf32>
      %22 = vector.broadcast %21 : f32 to vector<1x1xf32>
      %23 = arith.addf %17, %22 : vector<1x1xf32>
      %c0_9 = arith.constant 0 : index
      %c0_10 = arith.constant 0 : index
      %24 = vector.load %arg6[%c0_9, %c0_10] : memref<1x1xf32, #tpu.memory_space<vmem>>, vector<1x1xf32>
      tpu.vector_store %arg6[%c0_9, %c0_10], %23 {strides = array<i32>} : memref<1x1xf32, #tpu.memory_space<vmem>>, vector<1x1xf32>,
    } else {
    }
    %c1_i32 = arith.constant 1 : i32
    %11 = arith.cmpi eq, %arg0, %c1_i32 : i32
    %12 = arith.extui %11 : i1 to i32
    %c0_i32_3 = arith.constant 0 : i32
    %13 = arith.cmpi ne, %12, %c0_i32_3 : i32
    scf.if %13 {
      %c0_4 = arith.constant 0 : index
      %c0_5 = arith.constant 0 : index
      %14 = vector.load %arg6[%c0_4, %c0_5] : memref<1x1xf32, #tpu.memory_space<vmem>>, vector<1x1xf32>
      %15 = vector.shape_cast %14 : vector<1x1xf32> to vector<1x1x1xf32>
      %cst_6 = arith.constant dense<0.000000e+00> : vector<1xf32>
      %16 = vector.multi_reduction <add>, %15, %cst_6 [1, 2] : vector<1x1x1xf32> to vector<1xf32>
      %17 = vector.shape_cast %16 : vector<1xf32> to vector<1x1x1xf32>
      %18 = vector.extract %17[0, 0, 0] : f32 from vector<1x1x1xf32>
      %cst_7 = arith.constant 2.550000e+02 : f32
      %19 = arith.divf %18, %cst_7 : f32
      %cst_8 = arith.constant 9.99999974E-6 : f32
      %20 = arith.addf %19, %cst_8 : f32
      %cst_9 = arith.constant 1.000000e+00 : f32
      %21 = arith.divf %cst_9, %20 : f32
      %22 = vector.broadcast %21 : f32 to vector<8x256xf32>
      %23 = arith.mulf %7, %22 : vector<8x256xf32>
      %24 = arith.negf %23 : vector<8x256xf32>
      %25 = math.exp %24 : vector<8x256xf32>
      %cst_10 = arith.constant 1.000000e+00 : f32
      %26 = vector.broadcast %cst_10 : f32 to vector<8x256xf32>
      %27 = arith.addf %26, %25 : vector<8x256xf32>
      %28 = arith.divf %26, %27 : vector<8x256xf32>
      %29 = arith.mulf %0, %28 : vector<8x256xf32>
      %c0_11 = arith.constant 0 : index
      %c0_12 = arith.constant 0 : index
      %30 = vector.load %arg4[%c0_11, %c0_12] : memref<8x256xf32, #tpu.memory_space<vmem>>, vector<8x256xf32>
      tpu.vector_store %arg4[%c0_11, %c0_12], %29 {strides = array<i32>} : memref<8x256xf32, #tpu.memory_space<vmem>>, vector<8x256xf32>,
      %c0_i32_13 = arith.constant 0 : i32
      %31 = arith.cmpi eq, %arg1, %c0_i32_13 : i32
      %32 = arith.extui %31 : i1 to i32
      %c0_i32_14 = arith.constant 0 : i32
      %33 = arith.cmpi ne, %32, %c0_i32_14 : i32
      scf.if %33 {
        %cst_24 = arith.constant 0.000000e+00 : f32
        %42 = vector.broadcast %cst_24 : f32 to vector<4x256xf32>
        %c0_25 = arith.constant 0 : index
        %c0_26 = arith.constant 0 : index
        %43 = vector.load %arg7[%c0_25, %c0_26] : memref<4x256xf32, #tpu.memory_space<vmem>>, vector<4x256xf32>
        tpu.vector_store %arg7[%c0_25, %c0_26], %42 {strides = array<i32>} : memref<4x256xf32, #tpu.memory_space<vmem>>, vector<4x256xf32>,
      } else {
      }
      %c0_15 = arith.constant 0 : index
      %c0_16 = arith.constant 0 : index
      %34 = vector.load %arg7[%c0_15, %c0_16] : memref<4x256xf32, #tpu.memory_space<vmem>>, vector<4x256xf32>
      %c0_17 = arith.constant 0 : index
      %c0_18 = arith.constant 0 : index
      %35 = vector.load %arg3[%c0_17, %c0_18] : memref<4x8xf32, #tpu.memory_space<vmem>>, vector<4x8xf32>
      %cst_19 = arith.constant dense<0.000000e+00> : vector<4x256xf32>
      %36 = tpu.matmul %35, %29, %cst_19 {dimension_numbers = #tpu.dot_dimension_numbers<[1], [0], [0], [1], [0, 0, 1, 1], [], []>, precision = #tpu.contract_precision<fp32>} : vector<4x8xf32>, vector<8x256xf32>, vector<4x256xf32> -> vector<4x256xf32>
      %37 = arith.addf %34, %36 : vector<4x256xf32>
      %c0_20 = arith.constant 0 : index
      %c0_21 = arith.constant 0 : index
      %38 = vector.load %arg7[%c0_20, %c0_21] : memref<4x256xf32, #tpu.memory_space<vmem>>, vector<4x256xf32>
      tpu.vector_store %arg7[%c0_20, %c0_21], %37 {strides = array<i32>} : memref<4x256xf32, #tpu.memory_space<vmem>>, vector<4x256xf32>,
      %c0_i32_22 = arith.constant 0 : i32
      %39 = arith.cmpi eq, %arg1, %c0_i32_22 : i32
      %40 = arith.extui %39 : i1 to i32
      %c0_i32_23 = arith.constant 0 : i32
      %41 = arith.cmpi ne, %40, %c0_i32_23 : i32
      scf.if %41 {
        %c0_24 = arith.constant 0 : index
        %c0_25 = arith.constant 0 : index
        %42 = vector.load %arg7[%c0_24, %c0_25] : memref<4x256xf32, #tpu.memory_space<vmem>>, vector<4x256xf32>
        %43 = arith.mulf %42, %42 : vector<4x256xf32>
        %cst_26 = arith.constant dense<0.000000e+00> : vector<4xf32>
        %44 = vector.multi_reduction <add>, %43, %cst_26 [1] : vector<4x256xf32> to vector<4xf32>
        %45 = vector.shape_cast %44 : vector<4xf32> to vector<4x1xf32>
        %cst_27 = arith.constant 9.99999974E-6 : f32
        %46 = vector.broadcast %cst_27 : f32 to vector<4x1xf32>
        %47 = arith.addf %45, %46 : vector<4x1xf32>
        %48 = math.sqrt %47 : vector<4x1xf32>
        %49 = arith.mulf %48, %48 : vector<4x1xf32>
        %cst_28 = arith.constant dense<0.000000e+00> : vector<1xf32>
        %50 = vector.multi_reduction <add>, %49, %cst_28 [0] : vector<4x1xf32> to vector<1xf32>
        %51 = vector.shape_cast %50 : vector<1xf32> to vector<1x1xf32>
        %cst_29 = arith.constant 4.000000e+00 : f32
        %52 = vector.broadcast %cst_29 : f32 to vector<1x1xf32>
        %53 = arith.divf %51, %52 : vector<1x1xf32>
        %cst_30 = arith.constant 9.99999974E-6 : f32
        %54 = vector.broadcast %cst_30 : f32 to vector<1x1xf32>
        %55 = arith.addf %53, %54 : vector<1x1xf32>
        %56 = math.rsqrt %55 : vector<1x1xf32>
        %57 = vector.broadcast %56 : vector<1x1xf32> to vector<4x1xf32>
        %58 = arith.mulf %48, %57 : vector<4x1xf32>
        %59 = arith.negf %58 : vector<4x1xf32>
        %60 = math.exp %59 : vector<4x1xf32>
        %cst_31 = arith.constant 1.000000e+00 : f32
        %61 = vector.broadcast %cst_31 : f32 to vector<4x1xf32>
        %62 = arith.addf %61, %60 : vector<4x1xf32>
        %63 = arith.divf %61, %62 : vector<4x1xf32>
        %64 = vector.shape_cast %63 : vector<4x1xf32> to vector<4x1xf32>
        %65 = vector.broadcast %64 : vector<4x1xf32> to vector<4x128xf32>
        %c0_32 = arith.constant 0 : index
        %c0_33 = arith.constant 0 : index
        %66 = vector.load %arg5[%c0_32, %c0_33] : memref<4x128xf32, #tpu.memory_space<vmem>>, vector<4x128xf32>
        tpu.vector_store %arg5[%c0_32, %c0_33], %65 {strides = array<i32>} : memref<4x128xf32, #tpu.memory_space<vmem>>, vector<4x128xf32>,
      } else {
      }
    } else {
    }
    return
  }
  func.func @transform_0(%arg0: i32, %arg1: i32) -> (i32, i32) {
    %c0_i32 = arith.constant 0 : i32
    %c0_i32_0 = arith.constant 0 : i32
    return %arg1, %c0_i32 : i32, i32
  }
  func.func @transform_1(%arg0: i32, %arg1: i32) -> (i32, i32) {
    %c0_i32 = arith.constant 0 : i32
    %c0_i32_0 = arith.constant 0 : i32
    %c0_i32_1 = arith.constant 0 : i32
    return %c0_i32, %c0_i32_0 : i32, i32
  }
  func.func @transform_2(%arg0: i32, %arg1: i32) -> (i32, i32) {
    %0 = arith.muli %arg1, %arg0 : i32
    %c0_i32 = arith.constant 0 : i32
    %c0_i32_0 = arith.constant 0 : i32
    return %0, %c0_i32 : i32, i32
  }
  func.func @transform_3(%arg0: i32, %arg1: i32) -> (i32, i32) {
    %c0_i32 = arith.constant 0 : i32
    %c0_i32_0 = arith.constant 0 : i32
    %c0_i32_1 = arith.constant 0 : i32
    return %c0_i32, %c0_i32_0 : i32, i32
  }
}

</mosaic_0001>

<llo_original>
// kernel: tpu_custom_call.1
$region0: #{tpu_custom_call.1}
  #allocation0 [shape = 'u32[]', space=smem, size = 0x4, offset = 0x4, fixed_abs, tag = 'smem constant byte address 0x4 - core index']
  #allocation1 [shape = 'u32[144,128]{1,0:T(1,128)}', space=vmem, size = 0x12000, scoped, tag = 'internal scratch']
  #allocation2 [shape = 'f32[1,1]{1,0:T(1,128)}', space=vmem, size = 0x200, scoped, tag = 'scratch operand']
  #allocation3 [shape = 'f32[4,256]{1,0:T(4,128)}', space=vmem, size = 0x1000, scoped, tag = 'scratch operand']
  %s0 = inlined_call_operand.hbm [shape: f32[8,256], index: 0, kind: input, shape index: {}]
  %s1 = inlined_call_operand.hbm [shape: f32[4,8], index: 1, kind: input, shape index: {}]
  %s2 = inlined_call_operand.hbm [shape: f32[8,256], index: 2, kind: output, shape index: {0}]
  %s3 = inlined_call_operand.hbm [shape: f32[4,128], index: 3, kind: output, shape index: {1}]
  %4 = xla_tuple %s2, %s3
  %s5 = sld [smem:[#allocation0]]
  $region77: #{tpu_custom_call.1} parent=0
    _
  %s7 = ssub.s32 1, %s5
  %s8 = scalar_select 0, %s7, %s5
  $region1: #{tpu_custom_call.1} parent=0
    #allocation4 [shape = 'u8[8192]{0}', space=vmem, size = 0x2000, scoped, tag = 'input window, operand 0, single buffered']
    #allocation5 [shape = 's32[2]{0}', space=sflag, size = 0x8, scoped, tag = 'scoped memory for tpu_custom_call.1']
    #allocation6 [shape = 's32[2]{0}', space=sflag, size = 0x8, scoped, tag = 'scoped memory for tpu_custom_call.1']
    #allocation7 [shape = 'u8[2048]{0}', space=vmem, size = 0x800, scoped, tag = 'input window, operand 1, single buffered']
    #allocation8 [shape = 's32[1]{0}', space=sflag, size = 0x4, scoped, tag = 'scoped memory for tpu_custom_call.1']
    #allocation9 [shape = 'u8[16384]{0}', space=vmem, size = 0x4000, scoped, tag = 'output window, operand 0']
    #allocation10 [shape = 'u8[2048]{0}', space=vmem, size = 0x800, scoped, tag = 'output window, operand 1, single buffered']
    #allocation11 [shape = 's32[1]{0}', space=sflag, size = 0x4, scoped, tag = 'scoped memory for tpu_custom_call.1']
    %9 = vsyncpa [#allocation5], 0
    %10 = vsyncpa [#allocation8], 0
    %11 = vsyncpa [#allocation6], 0
    %s12 = scalar_lea.sflag [#allocation6], 1
    %13 = vsyncpa %s12, 0
    %14 = vsyncpa [#allocation11], 0
    loop: start=0, step=1, limit=4
    $region2: #{tpu_custom_call.1} parent=1 // loop_pre_header
      _
    $region3: #{tpu_custom_call.1} parent=1 // loop_header
      %s16 = sphi 0, %s20
      %p17 = scmp.ge.s32.totalorder %s16, 4
      %s23 = sphi 0, %s35
      %s24 = sphi 0, %s31
      %s25 = sphi 0, %s23
      %s26 = sphi 0, %s24
      %s27 = sphi 0, %s25
      %s28 = sphi 0, %s26
      %s38 = sphi 0, %s40
      %s41 = sphi 0, %s38
      %s42 = sphi 0, %s41
      %s58 = sphi 0, %s42
      %s62 = sphi 0, %s62
      %s64 = sphi 0, %s62
      %s65 = sphi 0, %s64
      %s79 = sphi 0, %s65
      %s87 = sphi 0, %s89
      %s90 = sphi 0, %s87
      %s91 = sphi 0, %s90
      %s107 = sphi 0, %s91
      %s111 = sphi 0, %s111
      %s113 = sphi 0, %s111
      %s114 = sphi 0, %s113
      %s128 = sphi 0, %s114
    $region4: #{tpu_custom_call.1} parent=1 // loop_header_branch
      %19 = sbr.rel (%p17) target = $region8
    $region5: #{tpu_custom_call.1} parent=1 // loop_body
      %s21 = ssub.s32 %s16, 1
      %s22 = ssub.s32 %s16, 2
      %s29 = sadd.s32 1, %s24
      %p30 = scmp.ge.s32.totalorder %s29, 1
      %s31 = scalar_select %p30, 0, %s29
      %s32 = sadd.s32 1, %s23
      %s33 = scalar_select %p30, %s32, %s23
      %p34 = scmp.ge.s32.totalorder %s33, 2
      %s35 = scalar_select %p34, 0, %s33
      %s36 = ssub.s32 %s24, %s31
      %p37 = scmp.eq.s32.totalorder %s36, 0
      %s39 = sadd.s32 %s38, 1
      %s40 = scalar_select %p37, %s38, %s39
      %p43 = pneg %p37
      %p44 = scmp.eq.s32.totalorder %s16, 1
      %p45 = por %p43, %p44
      %p46 = scmp.ne.s32.totalorder %s38, %s41
      %p47 = scmp.eq.s32.totalorder %s16, 0
      %p48 = por %p46, %p47
      %p49 = scmp.ne.s32.totalorder %s38, %s41
      %p50 = scmp.eq.s32.totalorder %s21, 1
      %p51 = por %p49, %p50
      %p52 = scmp.ne.s32.totalorder %s41, %s42
      %p53 = scmp.eq.s32.totalorder %s21, 0
      %p54 = por %p52, %p53
      %p55 = scmp.ne.s32.totalorder %s41, %s42
      %p56 = scmp.eq.s32.totalorder %s22, 1
      %p57 = por %p55, %p56
      %p59 = scmp.ne.s32.totalorder %s42, %s58
      %p60 = scmp.eq.s32.totalorder %s22, 0
      %p61 = por %p59, %p60
      %s63 = sadd.s32 %s62, 1
      %p66 = scmp.eq.s32.totalorder %s16, 1
      %p67 = scmp.ne.s32.totalorder %s62, %s64
      %p68 = scmp.eq.s32.totalorder %s16, 0
      %p69 = por %p67, %p68
      %p70 = scmp.ne.s32.totalorder %s62, %s64
      %p71 = scmp.eq.s32.totalorder %s21, 1
      %p72 = por %p70, %p71
      %p73 = scmp.ne.s32.totalorder %s64, %s65
      %p74 = scmp.eq.s32.totalorder %s21, 0
      %p75 = por %p73, %p74
      %p76 = scmp.ne.s32.totalorder %s64, %s65
      %p77 = scmp.eq.s32.totalorder %s22, 1
      %p78 = por %p76, %p77
      %p80 = scmp.ne.s32.totalorder %s65, %s79
      %p81 = scmp.eq.s32.totalorder %s22, 0
      %p82 = por %p80, %p81
      %s83 = smul.u32 %s24, %s23
      %s84 = smul.u32 %s31, %s35
      %s85 = ssub.s32 %s83, %s84
      %p86 = scmp.eq.s32.totalorder %s85, 0
      %s88 = sadd.s32 %s87, 1
      %s89 = scalar_select %p86, %s87, %s88
      %p92 = pneg %p86
      %p93 = scmp.eq.s32.totalorder %s16, 1
      %p94 = por %p92, %p93
      %p95 = scmp.ne.s32.totalorder %s87, %s90
      %p96 = scmp.eq.s32.totalorder %s16, 0
      %p97 = por %p95, %p96
      %p98 = scmp.ne.s32.totalorder %s87, %s90
      %p99 = scmp.eq.s32.totalorder %s21, 1
      %p100 = por %p98, %p99
      %p101 = scmp.ne.s32.totalorder %s90, %s91
      %p102 = scmp.eq.s32.totalorder %s21, 0
      %p103 = por %p101, %p102
      %p104 = scmp.ne.s32.totalorder %s90, %s91
      %p105 = scmp.eq.s32.totalorder %s22, 1
      %p106 = por %p104, %p105
      %p108 = scmp.ne.s32.totalorder %s91, %s107
      %p109 = scmp.eq.s32.totalorder %s22, 0
      %p110 = por %p108, %p109
      %s112 = sadd.s32 %s111, 1
      %p115 = scmp.eq.s32.totalorder %s16, 1
      %p116 = scmp.ne.s32.totalorder %s111, %s113
      %p117 = scmp.eq.s32.totalorder %s16, 0
      %p118 = por %p116, %p117
      %p119 = scmp.ne.s32.totalorder %s111, %s113
      %p120 = scmp.eq.s32.totalorder %s21, 1
      %p121 = por %p119, %p120
      %p122 = scmp.ne.s32.totalorder %s113, %s114
      %p123 = scmp.eq.s32.totalorder %s21, 0
      %p124 = por %p122, %p123
      %p125 = scmp.ne.s32.totalorder %s113, %s114
      %p126 = scmp.eq.s32.totalorder %s22, 1
      %p127 = por %p125, %p126
      %p129 = scmp.ne.s32.totalorder %s114, %s128
      %p130 = scmp.eq.s32.totalorder %s22, 0
      %p131 = por %p129, %p130
      %p132 = scmp.le.s32.totalorder 1, %s16
      %p133 = scmp.lt.s32.totalorder %s16, 3
      %p134 = pnand %p132, %p133
      %p135 = pneg %p134
      // Predicated region
      $region9: #{tpu_custom_call.1} parent=5 // pred_check
        _
      $region10: #{tpu_custom_call.1} parent=5 // pred_check_branch
        %137 = sbr.rel (%p134) target = $region12
      $region11: #{tpu_custom_call.1} parent=5 // pred_region
        %s138 = ssub.s32 %s16, 1
        // Predicated region
        $region13: #{tpu_custom_call.1} parent=11 // pred_check
          %p139 = pneg %p54
        $region14: #{tpu_custom_call.1} parent=11 // pred_check_branch
          %141 = sbr.rel (%p139) target = $region16
        $region15: #{tpu_custom_call.1} parent=11 // pred_region
          %s143 = ssub.s32 256, 256
          %144 = vsyncadd [#allocation5], %s143
          %s145 = smul.addr %s26, 2
          %s146 = smul.addr %s145, 128
          %s147 = scalar_lea.hbm %s0, %s146
          %s149 = sshll.u32 [#allocation4], 4
          %s150 = int_to_ptr.vmem [resolvable:$true] %s149
          %152 = dma.hbm_to_vmem [thread:$0]  %s147, 256, %s150, [#allocation5]
        $region16: #{tpu_custom_call.1} parent=11 // pred_fallthru
          _
        // Predicated region
        $region17: #{tpu_custom_call.1} parent=11 // pred_check
          %p153 = pneg %p75
        $region18: #{tpu_custom_call.1} parent=11 // pred_check_branch
          %155 = sbr.rel (%p153) target = $region20
        $region19: #{tpu_custom_call.1} parent=11 // pred_region
          %s157 = ssub.s32 64, 64
          %158 = vsyncadd [#allocation8], %s157
          %s160 = sshll.u32 [#allocation7], 4
          %s161 = int_to_ptr.vmem [resolvable:$true] %s160
          %163 = dma.hbm_to_vmem [thread:$0]  %s1, 64, %s161, [#allocation8]
        $region20: #{tpu_custom_call.1} parent=11 // pred_fallthru
          _
      $region12: #{tpu_custom_call.1} parent=5 // pred_fallthru
        _
      %p164 = scmp.lt.s32.totalorder %s16, 2
      // Predicated region
      $region21: #{tpu_custom_call.1} parent=5 // pred_check
        %p165 = pneg %p164
      $region22: #{tpu_custom_call.1} parent=5 // pred_check_branch
        %167 = sbr.rel (%p165) target = $region24
      $region23: #{tpu_custom_call.1} parent=5 // pred_region
        _
      $region24: #{tpu_custom_call.1} parent=5 // pred_fallthru
        _
      %p168 = scmp.le.s32.totalorder 1, %s16
      %p169 = scmp.lt.s32.totalorder %s16, 3
      %p170 = pnand %p168, %p169
      %p171 = pneg %p170
      // Predicated region
      $region25: #{tpu_custom_call.1} parent=5 // pred_check
        _
      $region26: #{tpu_custom_call.1} parent=5 // pred_check_branch
        %173 = sbr.rel (%p170) target = $region28
      $region27: #{tpu_custom_call.1} parent=5 // pred_region
        %s174 = ssub.s32 %s16, 1
        // Predicated region
        $region29: #{tpu_custom_call.1} parent=27 // pred_check
          %p175 = pneg %p54
        $region30: #{tpu_custom_call.1} parent=27 // pred_check_branch
          %177 = sbr.rel (%p175) target = $region32
        $region31: #{tpu_custom_call.1} parent=27 // pred_region
          %178 = dma.done [#allocation5], 256
        $region32: #{tpu_custom_call.1} parent=27 // pred_fallthru
          _
        // Predicated region
        $region33: #{tpu_custom_call.1} parent=27 // pred_check
          %p179 = pneg %p75
        $region34: #{tpu_custom_call.1} parent=27 // pred_check_branch
          %181 = sbr.rel (%p179) target = $region36
        $region35: #{tpu_custom_call.1} parent=27 // pred_region
          %182 = dma.done [#allocation8], 64
        $region36: #{tpu_custom_call.1} parent=27 // pred_fallthru
          _
        %p183 = pneg %p54
        %p184 = pneg %p51
        %p185 = pneg %p75
        %p186 = pneg %p72
        %p187 = pneg %p103
        %p188 = pneg %p100
        %s189 = sand.u32 %s90, 1
        %s190 = scalar_lea.sflag [#allocation6], %s189
        %s191 = sand.u32 %s90, 1
        %s192 = smul.addr %s191, 16
        %s193 = scalar_lea.vmem [#allocation9], %s192
        %p194 = pneg %p124
        %p195 = pneg %p121
        %s196 = smul.u32 %s26, %s25
        %v197 = vld [vmem:[#allocation4] sm:$0xff]
        %v198 = vld [vmem:[#allocation4 + $0x8] sm:$0xff]
        %v199 = vadd.f32 %v197, %v198
        %200 = vadd.xlane.f32.xlu0 %v199
        %v201 = vpop.xlane.xlu0 %200
        %v202 = vrcp.pop 256.0
        %v203 = vmul.f32 %v201, %v202
        %v204 = vsub.f32 %v197, %v203
        %v205 = vsub.f32 %v198, %v203
        %v206 = vmul.f32 %v204, %v204
        %v207 = vmul.f32 %v205, %v205
        %p208 = scmp.eq.s32.totalorder %s25, 0
        // Predicated region
        $region37: #{tpu_custom_call.1} parent=27 // pred_check
          %p209 = pneg %p208
        $region38: #{tpu_custom_call.1} parent=27 // pred_check_branch
          %211 = sbr.rel (%p209) target = $region40
        $region39: #{tpu_custom_call.1} parent=27 // pred_region
          %p212 = scmp.eq.s32.totalorder %s26, 0
          // Predicated region
          $region41: #{tpu_custom_call.1} parent=39 // pred_check
            %p213 = pneg %p212
          $region42: #{tpu_custom_call.1} parent=39 // pred_check_branch
            %215 = sbr.rel (%p213) target = $region44
          $region43: #{tpu_custom_call.1} parent=39 // pred_region
            %vm216 = vcmask 0
            %217 = vst.msk [vmem:[#allocation2] sm:$0x1] %vm216, 0.0
          $region44: #{tpu_custom_call.1} parent=39 // pred_fallthru
            _
          %v218 = vld [vmem:[#allocation2] sm:$0x1]
          %v219 = vadd.f32 %v206, %v207
          %220 = vadd.xlane.f32.xlu0 %v219
          %v221 = vpop.xlane.xlu0 %220
          %v222 = vrot.slane %v221, 4
          %v223 = vadd.f32 %v221, %v222
          %v224 = vrot.slane %v223, 2
          %v225 = vadd.f32 %v223, %v224
          %v226 = vrot.slane %v225, 1
          %v227 = vadd.f32 %v225, %v226
          %s228 = vtos %v227
          %v229 = vstv %s228
          %v230 = vadd.f32 %v218, %v229
          %vm231 = vcmask 0
          %232 = vst.msk [vmem:[#allocation2] sm:$0x1] %vm231, %v230
        $region40: #{tpu_custom_call.1} parent=27 // pred_fallthru
          _
        %p233 = scmp.eq.s32.totalorder %s25, 1
        // Predicated region
        $region45: #{tpu_custom_call.1} parent=27 // pred_check
          %p234 = pneg %p233
        $region46: #{tpu_custom_call.1} parent=27 // pred_check_branch
          %236 = sbr.rel (%p234) target = $region48
        $region47: #{tpu_custom_call.1} parent=27 // pred_region
          %v237 = vld [vmem:[#allocation2] sm:$0x1]
          %v238 = vadd.f32 %v237, 0.0
          %s239 = vtos %v238
          %v240 = vrcp.pop 255.0
          %s241 = vtos %v240
          %s242 = smul.f32 %s239, %s241
          %s243 = sadd.f32 %s242, 1e-05
          %v244 = vstv %s243
          %v245 = vrcp.pop %v244
          %s246 = vtos %v245
          %v247 = vstv %s246
          %v248 = vmul.f32 %v206, %v247
          %v249 = vmul.f32 %v207, %v247
          %v250 = vxor.u32 %v248, 2147483648
          %v251 = vxor.u32 %v249, 2147483648
          %v252 = vmul.f32 %v250, 1.442695
          %v253 = vpow.pop %v252
          %v254 = vmul.f32 %v251, 1.442695
          %v255 = vpow.pop %v254
          %v256 = vadd.f32 %v253, 1.0
          %v257 = vadd.f32 %v255, 1.0
          %v258 = vrcp.pop %v256
          %v259 = vmul.f32 1.0, %v258
          %v260 = vrcp.pop %v257
          %v261 = vmul.f32 1.0, %v260
          %v262 = vmul.f32 %v197, %v259
          %v263 = vmul.f32 %v198, %v261
          %264 = vst [vmem:[%s193] sm:$0xff] %v262
          %265 = vst [vmem:[%s193 + $0x8] sm:$0xff] %v263
          %p266 = scmp.eq.s32.totalorder %s26, 0
          // Predicated region
          $region49: #{tpu_custom_call.1} parent=47 // pred_check
            %p267 = pneg %p266
          $region50: #{tpu_custom_call.1} parent=47 // pred_check_branch
            %269 = sbr.rel (%p267) target = $region52
          $region51: #{tpu_custom_call.1} parent=47 // pred_region
            %270 = vst [vmem:[#allocation3] sm:$0xff] 0.0
          $region52: #{tpu_custom_call.1} parent=47 // pred_fallthru
            _
          %v271 = vld [vmem:[#allocation3] sm:$0xff]
          %v272 = vld [vmem:[#allocation7] sm:$0xf]
          %vm273 = vcmask 64512
          %v275 = vsel %vm273, %v272, 0
          %277 = vmatprep.subr.mxu0 0.0
          %278 = vmatpush1.msra.mxu0 0.0
          %279 = vmatprep.subr.mxu0 0.0
          %280 = vmatpush1.msra.mxu0 0.0
          %281 = vmatprep.subr.mxu0 0.0
          %282 = vmatpush1.msra.mxu0 0.0
          %283 = vmatprep.subr.mxu0 0.0
          %284 = vmatpush1.msra.mxu0 0.0
          %285 = vmatprep.subr.mxu0 0.0
          %286 = vmatpush1.msra.mxu0 0.0
          %287 = vmatprep.subr.mxu0 0.0
          %288 = vmatpush1.msra.mxu0 0.0
          %289 = vmatprep.subr.mxu0 0.0
          %290 = vmatpush1.msra.mxu0 0.0
          %291 = vmatprep.subr.mxu0 0.0
          %292 = vmatpush1.msra.mxu0 0.0
          %293 = vmatprep.subr.mxu0 0.0
          %294 = vmatpush1.msra.mxu0 0.0
          %295 = vmatprep.subr.mxu0 0.0
          %296 = vmatpush1.msra.mxu0 0.0
          %297 = vmatprep.subr.mxu0 0.0
          %298 = vmatpush1.msra.mxu0 0.0
          %299 = vmatprep.subr.mxu0 0.0
          %300 = vmatpush1.msra.mxu0 0.0
          %301 = vmatprep.subr.mxu0 0.0
          %302 = vmatpush1.msra.mxu0 0.0
          %303 = vmatprep.subr.mxu0 0.0
          %304 = vmatpush1.msra.mxu0 0.0
          %305 = vmatprep.subr.mxu0 0.0
          %306 = vmatpush1.msra.mxu0 0.0
          %v307 = vand.u32 %v263, 4294901760
          %308 = vmatprep.subr.mxu0 %v307
          %v309 = vand.u32 %v262, 4294901760
          %310 = vmatpush1.msra.mxu0 %v309
          %311 = vmatprep.subr.mxu0 0.0
          %312 = vmatpush2.msra.mxu0 0.0
          %313 = vmatprep.subr.mxu0 0.0
          %314 = vmatpush2.msra.mxu0 0.0
          %315 = vmatprep.subr.mxu0 0.0
          %316 = vmatpush2.msra.mxu0 0.0
          %317 = vmatprep.subr.mxu0 0.0
          %318 = vmatpush2.msra.mxu0 0.0
          %319 = vmatprep.subr.mxu0 0.0
          %320 = vmatpush2.msra.mxu0 0.0
          %321 = vmatprep.subr.mxu0 0.0
          %322 = vmatpush2.msra.mxu0 0.0
          %323 = vmatprep.subr.mxu0 0.0
          %324 = vmatpush2.msra.mxu0 0.0
          %325 = vmatprep.subr.mxu0 0.0
          %326 = vmatpush2.msra.mxu0 0.0
          %327 = vmatprep.subr.mxu0 0.0
          %328 = vmatpush2.msra.mxu0 0.0
          %329 = vmatprep.subr.mxu0 0.0
          %330 = vmatpush2.msra.mxu0 0.0
          %331 = vmatprep.subr.mxu0 0.0
          %332 = vmatpush2.msra.mxu0 0.0
          %333 = vmatprep.subr.mxu0 0.0
          %334 = vmatpush2.msra.mxu0 0.0
          %335 = vmatprep.subr.mxu0 0.0
          %336 = vmatpush2.msra.mxu0 0.0
          %337 = vmatprep.subr.mxu0 0.0
          %338 = vmatpush2.msra.mxu0 0.0
          %339 = vmatprep.subr.mxu0 0.0
          %340 = vmatpush2.msra.mxu0 0.0
          %341 = vmatprep.subr.mxu0 0.0
          %342 = vmatpush2.msra.mxu0 0.0
          %343 = vmatprep.mubr.f32.mxu0 0.0
          %v344 = vand.u32 %v275, 4294901760
          %v345 = vsub.f32 %v275, %v344
          %v346 = vand.u32 %v345, 4294901760
          %v347 = vsub.f32 %v345, %v346
          %v348 = vand.u32 %v347, 4294901760
          %349 = vmatmul.mubr.f32.gmra.mxu0 %v348
          %v350 = vpop.f32.mrf.mxu0
          %v351 = vadd.f32 0.0, %v350
          %v352 = vpop.f32.mrf.mxu0
          %v353 = vadd.f32 0.0, %v352
          %354 = vdwg.mxu0
          %355 = vmatprep.subr.mxu0 0.0
          %356 = vmatpush1.msra.mxu0 0.0
          %357 = vmatprep.subr.mxu0 0.0
          %358 = vmatpush1.msra.mxu0 0.0
          %359 = vmatprep.subr.mxu0 0.0
          %360 = vmatpush1.msra.mxu0 0.0
          %361 = vmatprep.subr.mxu0 0.0
          %362 = vmatpush1.msra.mxu0 0.0
          %363 = vmatprep.subr.mxu0 0.0
          %364 = vmatpush1.msra.mxu0 0.0
          %365 = vmatprep.subr.mxu0 0.0
          %366 = vmatpush1.msra.mxu0 0.0
          %367 = vmatprep.subr.mxu0 0.0
          %368 = vmatpush1.msra.mxu0 0.0
          %369 = vmatprep.subr.mxu0 0.0
          %370 = vmatpush1.msra.mxu0 0.0
          %371 = vmatprep.subr.mxu0 0.0
          %372 = vmatpush1.msra.mxu0 0.0
          %373 = vmatprep.subr.mxu0 0.0
          %374 = vmatpush1.msra.mxu0 0.0
          %375 = vmatprep.subr.mxu0 0.0
          %376 = vmatpush1.msra.mxu0 0.0
          %377 = vmatprep.subr.mxu0 0.0
          %378 = vmatpush1.msra.mxu0 0.0
          %379 = vmatprep.subr.mxu0 0.0
          %380 = vmatpush1.msra.mxu0 0.0
          %381 = vmatprep.subr.mxu0 0.0
          %382 = vmatpush1.msra.mxu0 0.0
          %383 = vmatprep.subr.mxu0 0.0
          %384 = vmatpush1.msra.mxu0 0.0
          %v385 = vand.u32 %v263, 4294901760
          %v386 = vsub.f32 %v263, %v385
          %v387 = vand.u32 %v386, 4294901760
          %v388 = vsub.f32 %v386, %v387
          %v389 = vand.u32 %v388, 4294901760
          %390 = vmatprep.subr.mxu0 %v389
          %v391 = vand.u32 %v262, 4294901760
          %v392 = vsub.f32 %v262, %v391
          %v393 = vand.u32 %v392, 4294901760
          %v394 = vsub.f32 %v392, %v393
          %v395 = vand.u32 %v394, 4294901760
          %396 = vmatpush1.msra.mxu0 %v395
          %397 = vmatprep.subr.mxu0 0.0
          %398 = vmatpush2.msra.mxu0 0.0
          %399 = vmatprep.subr.mxu0 0.0
          %400 = vmatpush2.msra.mxu0 0.0
          %401 = vmatprep.subr.mxu0 0.0
          %402 = vmatpush2.msra.mxu0 0.0
          %403 = vmatprep.subr.mxu0 0.0
          %404 = vmatpush2.msra.mxu0 0.0
          %405 = vmatprep.subr.mxu0 0.0
          %406 = vmatpush2.msra.mxu0 0.0
          %407 = vmatprep.subr.mxu0 0.0
          %408 = vmatpush2.msra.mxu0 0.0
          %409 = vmatprep.subr.mxu0 0.0
          %410 = vmatpush2.msra.mxu0 0.0
          %411 = vmatprep.subr.mxu0 0.0
          %412 = vmatpush2.msra.mxu0 0.0
          %413 = vmatprep.subr.mxu0 0.0
          %414 = vmatpush2.msra.mxu0 0.0
          %415 = vmatprep.subr.mxu0 0.0
          %416 = vmatpush2.msra.mxu0 0.0
          %417 = vmatprep.subr.mxu0 0.0
          %418 = vmatpush2.msra.mxu0 0.0
          %419 = vmatprep.subr.mxu0 0.0
          %420 = vmatpush2.msra.mxu0 0.0
          %421 = vmatprep.subr.mxu0 0.0
          %422 = vmatpush2.msra.mxu0 0.0
          %423 = vmatprep.subr.mxu0 0.0
          %424 = vmatpush2.msra.mxu0 0.0
          %425 = vmatprep.subr.mxu0 0.0
          %426 = vmatpush2.msra.mxu0 0.0
          %427 = vmatprep.subr.mxu0 0.0
          %428 = vmatpush2.msra.mxu0 0.0
          %429 = vmatprep.mubr.f32.mxu0 0.0
          %v430 = vand.u32 %v275, 4294901760
          %431 = vmatmul.mubr.f32.gmra.mxu0 %v430
          %v432 = vpop.f32.mrf.mxu0
          %v433 = vadd.f32 %v351, %v432
          %v434 = vpop.f32.mrf.mxu0
          %v435 = vadd.f32 %v353, %v434
          %436 = vdwg.mxu0
          %437 = vmatprep.subr.mxu0 0.0
          %438 = vmatpush1.msra.mxu0 0.0
          %439 = vmatprep.subr.mxu0 0.0
          %440 = vmatpush1.msra.mxu0 0.0
          %441 = vmatprep.subr.mxu0 0.0
          %442 = vmatpush1.msra.mxu0 0.0
          %443 = vmatprep.subr.mxu0 0.0
          %444 = vmatpush1.msra.mxu0 0.0
          %445 = vmatprep.subr.mxu0 0.0
          %446 = vmatpush1.msra.mxu0 0.0
          %447 = vmatprep.subr.mxu0 0.0
          %448 = vmatpush1.msra.mxu0 0.0
          %449 = vmatprep.subr.mxu0 0.0
          %450 = vmatpush1.msra.mxu0 0.0
          %451 = vmatprep.subr.mxu0 0.0
          %452 = vmatpush1.msra.mxu0 0.0
          %453 = vmatprep.subr.mxu0 0.0
          %454 = vmatpush1.msra.mxu0 0.0
          %455 = vmatprep.subr.mxu0 0.0
          %456 = vmatpush1.msra.mxu0 0.0
          %457 = vmatprep.subr.mxu0 0.0
          %458 = vmatpush1.msra.mxu0 0.0
          %459 = vmatprep.subr.mxu0 0.0
          %460 = vmatpush1.msra.mxu0 0.0
          %461 = vmatprep.subr.mxu0 0.0
          %462 = vmatpush1.msra.mxu0 0.0
          %463 = vmatprep.subr.mxu0 0.0
          %464 = vmatpush1.msra.mxu0 0.0
          %465 = vmatprep.subr.mxu0 0.0
          %466 = vmatpush1.msra.mxu0 0.0
          %v467 = vand.u32 %v263, 4294901760
          %v468 = vsub.f32 %v263, %v467
          %469 = vmatprep.subr.mxu0 %v468
          %v470 = vand.u32 %v262, 4294901760
          %v471 = vsub.f32 %v262, %v470
          %472 = vmatpush1.msra.mxu0 %v471
          %473 = vmatprep.subr.mxu0 0.0
          %474 = vmatpush2.msra.mxu0 0.0
          %475 = vmatprep.subr.mxu0 0.0
          %476 = vmatpush2.msra.mxu0 0.0
          %477 = vmatprep.subr.mxu0 0.0
          %478 = vmatpush2.msra.mxu0 0.0
          %479 = vmatprep.subr.mxu0 0.0
          %480 = vmatpush2.msra.mxu0 0.0
          %481 = vmatprep.subr.mxu0 0.0
          %482 = vmatpush2.msra.mxu0 0.0
          %483 = vmatprep.subr.mxu0 0.0
          %484 = vmatpush2.msra.mxu0 0.0
          %485 = vmatprep.subr.mxu0 0.0
          %486 = vmatpush2.msra.mxu0 0.0
          %487 = vmatprep.subr.mxu0 0.0
          %488 = vmatpush2.msra.mxu0 0.0
          %489 = vmatprep.subr.mxu0 0.0
          %490 = vmatpush2.msra.mxu0 0.0
          %491 = vmatprep.subr.mxu0 0.0
          %492 = vmatpush2.msra.mxu0 0.0
          %493 = vmatprep.subr.mxu0 0.0
          %494 = vmatpush2.msra.mxu0 0.0
          %495 = vmatprep.subr.mxu0 0.0
          %496 = vmatpush2.msra.mxu0 0.0
          %497 = vmatprep.subr.mxu0 0.0
          %498 = vmatpush2.msra.mxu0 0.0
          %499 = vmatprep.subr.mxu0 0.0
          %500 = vmatpush2.msra.mxu0 0.0
          %501 = vmatprep.subr.mxu0 0.0
          %502 = vmatpush2.msra.mxu0 0.0
          %503 = vmatprep.subr.mxu0 0.0
          %504 = vmatpush2.msra.mxu0 0.0
          %505 = vmatprep.mubr.f32.mxu0 0.0
          %v506 = vand.u32 %v275, 4294901760
          %v507 = vsub.f32 %v275, %v506
          %508 = vmatmul.mubr.f32.gmra.mxu0 %v507
          %v509 = vpop.f32.mrf.mxu0
          %v510 = vadd.f32 %v433, %v509
          %v511 = vpop.f32.mrf.mxu0
          %v512 = vadd.f32 %v435, %v511
          %513 = vdwg.mxu0
          %514 = vmatprep.subr.mxu0 0.0
          %515 = vmatpush1.msra.mxu0 0.0
          %516 = vmatprep.subr.mxu0 0.0
          %517 = vmatpush1.msra.mxu0 0.0
          %518 = vmatprep.subr.mxu0 0.0
          %519 = vmatpush1.msra.mxu0 0.0
          %520 = vmatprep.subr.mxu0 0.0
          %521 = vmatpush1.msra.mxu0 0.0
          %522 = vmatprep.subr.mxu0 0.0
          %523 = vmatpush1.msra.mxu0 0.0
          %524 = vmatprep.subr.mxu0 0.0
          %525 = vmatpush1.msra.mxu0 0.0
          %526 = vmatprep.subr.mxu0 0.0
          %527 = vmatpush1.msra.mxu0 0.0
          %528 = vmatprep.subr.mxu0 0.0
          %529 = vmatpush1.msra.mxu0 0.0
          %530 = vmatprep.subr.mxu0 0.0
          %531 = vmatpush1.msra.mxu0 0.0
          %532 = vmatprep.subr.mxu0 0.0
          %533 = vmatpush1.msra.mxu0 0.0
          %534 = vmatprep.subr.mxu0 0.0
          %535 = vmatpush1.msra.mxu0 0.0
          %536 = vmatprep.subr.mxu0 0.0
          %537 = vmatpush1.msra.mxu0 0.0
          %538 = vmatprep.subr.mxu0 0.0
          %539 = vmatpush1.msra.mxu0 0.0
          %540 = vmatprep.subr.mxu0 0.0
          %541 = vmatpush1.msra.mxu0 0.0
          %542 = vmatprep.subr.mxu0 0.0
          %543 = vmatpush1.msra.mxu0 0.0
          %v544 = vand.u32 %v263, 4294901760
          %545 = vmatprep.subr.mxu0 %v544
          %v546 = vand.u32 %v262, 4294901760
          %547 = vmatpush1.msra.mxu0 %v546
          %548 = vmatprep.subr.mxu0 0.0
          %549 = vmatpush2.msra.mxu0 0.0
          %550 = vmatprep.subr.mxu0 0.0
          %551 = vmatpush2.msra.mxu0 0.0
          %552 = vmatprep.subr.mxu0 0.0
          %553 = vmatpush2.msra.mxu0 0.0
          %554 = vmatprep.subr.mxu0 0.0
          %555 = vmatpush2.msra.mxu0 0.0
          %556 = vmatprep.subr.mxu0 0.0
          %557 = vmatpush2.msra.mxu0 0.0
          %558 = vmatprep.subr.mxu0 0.0
          %559 = vmatpush2.msra.mxu0 0.0
          %560 = vmatprep.subr.mxu0 0.0
          %561 = vmatpush2.msra.mxu0 0.0
          %562 = vmatprep.subr.mxu0 0.0
          %563 = vmatpush2.msra.mxu0 0.0
          %564 = vmatprep.subr.mxu0 0.0
          %565 = vmatpush2.msra.mxu0 0.0
          %566 = vmatprep.subr.mxu0 0.0
          %567 = vmatpush2.msra.mxu0 0.0
          %568 = vmatprep.subr.mxu0 0.0
          %569 = vmatpush2.msra.mxu0 0.0
          %570 = vmatprep.subr.mxu0 0.0
          %571 = vmatpush2.msra.mxu0 0.0
          %572 = vmatprep.subr.mxu0 0.0
          %573 = vmatpush2.msra.mxu0 0.0
          %574 = vmatprep.subr.mxu0 0.0
          %575 = vmatpush2.msra.mxu0 0.0
          %576 = vmatprep.subr.mxu0 0.0
          %577 = vmatpush2.msra.mxu0 0.0
          %578 = vmatprep.subr.mxu0 0.0
          %579 = vmatpush2.msra.mxu0 0.0
          %580 = vmatprep.mubr.f32.mxu0 0.0
          %v581 = vand.u32 %v275, 4294901760
          %v582 = vsub.f32 %v275, %v581
          %v583 = vand.u32 %v582, 4294901760
          %584 = vmatmul.mubr.f32.gmra.mxu0 %v583
          %v585 = vpop.f32.mrf.mxu0
          %v586 = vadd.f32 %v510, %v585
          %v587 = vpop.f32.mrf.mxu0
          %v588 = vadd.f32 %v512, %v587
          %589 = vdwg.mxu0
          %590 = vmatprep.subr.mxu0 0.0
          %591 = vmatpush1.msra.mxu0 0.0
          %592 = vmatprep.subr.mxu0 0.0
          %593 = vmatpush1.msra.mxu0 0.0
          %594 = vmatprep.subr.mxu0 0.0
          %595 = vmatpush1.msra.mxu0 0.0
          %596 = vmatprep.subr.mxu0 0.0
          %597 = vmatpush1.msra.mxu0 0.0
          %598 = vmatprep.subr.mxu0 0.0
          %599 = vmatpush1.msra.mxu0 0.0
          %600 = vmatprep.subr.mxu0 0.0
          %601 = vmatpush1.msra.mxu0 0.0
          %602 = vmatprep.subr.mxu0 0.0
          %603 = vmatpush1.msra.mxu0 0.0
          %604 = vmatprep.subr.mxu0 0.0
          %605 = vmatpush1.msra.mxu0 0.0
          %606 = vmatprep.subr.mxu0 0.0
          %607 = vmatpush1.msra.mxu0 0.0
          %608 = vmatprep.subr.mxu0 0.0
          %609 = vmatpush1.msra.mxu0 0.0
          %610 = vmatprep.subr.mxu0 0.0
          %611 = vmatpush1.msra.mxu0 0.0
          %612 = vmatprep.subr.mxu0 0.0
          %613 = vmatpush1.msra.mxu0 0.0
          %614 = vmatprep.subr.mxu0 0.0
          %615 = vmatpush1.msra.mxu0 0.0
          %616 = vmatprep.subr.mxu0 0.0
          %617 = vmatpush1.msra.mxu0 0.0
          %618 = vmatprep.subr.mxu0 0.0
          %619 = vmatpush1.msra.mxu0 0.0
          %v620 = vand.u32 %v263, 4294901760
          %v621 = vsub.f32 %v263, %v620
          %v622 = vand.u32 %v621, 4294901760
          %623 = vmatprep.subr.mxu0 %v622
          %v624 = vand.u32 %v262, 4294901760
          %v625 = vsub.f32 %v262, %v624
          %v626 = vand.u32 %v625, 4294901760
          %627 = vmatpush1.msra.mxu0 %v626
          %628 = vmatprep.subr.mxu0 0.0
          %629 = vmatpush2.msra.mxu0 0.0
          %630 = vmatprep.subr.mxu0 0.0
          %631 = vmatpush2.msra.mxu0 0.0
          %632 = vmatprep.subr.mxu0 0.0
          %633 = vmatpush2.msra.mxu0 0.0
          %634 = vmatprep.subr.mxu0 0.0
          %635 = vmatpush2.msra.mxu0 0.0
          %636 = vmatprep.subr.mxu0 0.0
          %637 = vmatpush2.msra.mxu0 0.0
          %638 = vmatprep.subr.mxu0 0.0
          %639 = vmatpush2.msra.mxu0 0.0
          %640 = vmatprep.subr.mxu0 0.0
          %641 = vmatpush2.msra.mxu0 0.0
          %642 = vmatprep.subr.mxu0 0.0
          %643 = vmatpush2.msra.mxu0 0.0
          %644 = vmatprep.subr.mxu0 0.0
          %645 = vmatpush2.msra.mxu0 0.0
          %646 = vmatprep.subr.mxu0 0.0
          %647 = vmatpush2.msra.mxu0 0.0
          %648 = vmatprep.subr.mxu0 0.0
          %649 = vmatpush2.msra.mxu0 0.0
          %650 = vmatprep.subr.mxu0 0.0
          %651 = vmatpush2.msra.mxu0 0.0
          %652 = vmatprep.subr.mxu0 0.0
          %653 = vmatpush2.msra.mxu0 0.0
          %654 = vmatprep.subr.mxu0 0.0
          %655 = vmatpush2.msra.mxu0 0.0
          %656 = vmatprep.subr.mxu0 0.0
          %657 = vmatpush2.msra.mxu0 0.0
          %658 = vmatprep.subr.mxu0 0.0
          %659 = vmatpush2.msra.mxu0 0.0
          %660 = vmatprep.mubr.f32.mxu0 0.0
          %v661 = vand.u32 %v275, 4294901760
          %662 = vmatmul.mubr.f32.gmra.mxu0 %v661
          %v663 = vpop.f32.mrf.mxu0
          %v664 = vadd.f32 %v586, %v663
          %v665 = vpop.f32.mrf.mxu0
          %v666 = vadd.f32 %v588, %v665
          %667 = vdwg.mxu0
          %668 = vmatprep.subr.mxu0 0.0
          %669 = vmatpush1.msra.mxu0 0.0
          %670 = vmatprep.subr.mxu0 0.0
          %671 = vmatpush1.msra.mxu0 0.0
          %672 = vmatprep.subr.mxu0 0.0
          %673 = vmatpush1.msra.mxu0 0.0
          %674 = vmatprep.subr.mxu0 0.0
          %675 = vmatpush1.msra.mxu0 0.0
          %676 = vmatprep.subr.mxu0 0.0
          %677 = vmatpush1.msra.mxu0 0.0
          %678 = vmatprep.subr.mxu0 0.0
          %679 = vmatpush1.msra.mxu0 0.0
          %680 = vmatprep.subr.mxu0 0.0
          %681 = vmatpush1.msra.mxu0 0.0
          %682 = vmatprep.subr.mxu0 0.0
          %683 = vmatpush1.msra.mxu0 0.0
          %684 = vmatprep.subr.mxu0 0.0
          %685 = vmatpush1.msra.mxu0 0.0
          %686 = vmatprep.subr.mxu0 0.0
          %687 = vmatpush1.msra.mxu0 0.0
          %688 = vmatprep.subr.mxu0 0.0
          %689 = vmatpush1.msra.mxu0 0.0
          %690 = vmatprep.subr.mxu0 0.0
          %691 = vmatpush1.msra.mxu0 0.0
          %692 = vmatprep.subr.mxu0 0.0
          %693 = vmatpush1.msra.mxu0 0.0
          %694 = vmatprep.subr.mxu0 0.0
          %695 = vmatpush1.msra.mxu0 0.0
          %696 = vmatprep.subr.mxu0 0.0
          %697 = vmatpush1.msra.mxu0 0.0
          %v698 = vand.u32 %v263, 4294901760
          %699 = vmatprep.subr.mxu0 %v698
          %v700 = vand.u32 %v262, 4294901760
          %701 = vmatpush1.msra.mxu0 %v700
          %702 = vmatprep.subr.mxu0 0.0
          %703 = vmatpush2.msra.mxu0 0.0
          %704 = vmatprep.subr.mxu0 0.0
          %705 = vmatpush2.msra.mxu0 0.0
          %706 = vmatprep.subr.mxu0 0.0
          %707 = vmatpush2.msra.mxu0 0.0
          %708 = vmatprep.subr.mxu0 0.0
          %709 = vmatpush2.msra.mxu0 0.0
          %710 = vmatprep.subr.mxu0 0.0
          %711 = vmatpush2.msra.mxu0 0.0
          %712 = vmatprep.subr.mxu0 0.0
          %713 = vmatpush2.msra.mxu0 0.0
          %714 = vmatprep.subr.mxu0 0.0
          %715 = vmatpush2.msra.mxu0 0.0
          %716 = vmatprep.subr.mxu0 0.0
          %717 = vmatpush2.msra.mxu0 0.0
          %718 = vmatprep.subr.mxu0 0.0
          %719 = vmatpush2.msra.mxu0 0.0
          %720 = vmatprep.subr.mxu0 0.0
          %721 = vmatpush2.msra.mxu0 0.0
          %722 = vmatprep.subr.mxu0 0.0
          %723 = vmatpush2.msra.mxu0 0.0
          %724 = vmatprep.subr.mxu0 0.0
          %725 = vmatpush2.msra.mxu0 0.0
          %726 = vmatprep.subr.mxu0 0.0
          %727 = vmatpush2.msra.mxu0 0.0
          %728 = vmatprep.subr.mxu0 0.0
          %729 = vmatpush2.msra.mxu0 0.0
          %730 = vmatprep.subr.mxu0 0.0
          %731 = vmatpush2.msra.mxu0 0.0
          %732 = vmatprep.subr.mxu0 0.0
          %733 = vmatpush2.msra.mxu0 0.0
          %734 = vmatprep.mubr.f32.mxu0 0.0
          %v735 = vand.u32 %v275, 4294901760
          %736 = vmatmul.mubr.f32.gmra.mxu0 %v735
          %v737 = vpop.f32.mrf.mxu0
          %v738 = vadd.f32 %v664, %v737
          %v739 = vpop.f32.mrf.mxu0
          %v740 = vadd.f32 %v666, %v739
          %741 = vdwg.mxu0
          %v744 = vcombine.low %v738, %v740
          %v746 = vadd.f32 %v271, %v744
          %747 = vst [vmem:[#allocation3] sm:$0xff] %v746
          // Predicated region
          $region53: #{tpu_custom_call.1} parent=47 // pred_check
            %p748 = pneg %p266
          $region54: #{tpu_custom_call.1} parent=47 // pred_check_branch
            %750 = sbr.rel (%p748) target = $region56
          $region55: #{tpu_custom_call.1} parent=47 // pred_region
            %v751 = vld [vmem:[#allocation3] sm:$0xff]
            %v752 = vmul.f32 %v751, %v751
            %v754 = vcombine.high %v752, %v752
            %vm756 = vcmask 1043456
            %v757 = vsel %vm756, %v752, 0.0
            %v758 = vsel %vm756, %v754, 0.0
            %v759 = vadd.f32 %v757, %v758
            %760 = vadd.xlane.f32.xlu0 %v759
            %v761 = vpop.xlane.xlu0 %760
            %v762 = vadd.f32 %v761, 1e-05
            %v763 = vrsqrt.pop %v762
            %v764 = vmul.f32 %v762, %v763
            %vm765 = vcmp.eq.f32.partialorder %v762, inf
            %v766 = vsel %vm765, %v762, %v764
            %vm767 = vcmp.eq.f32.partialorder %v762, 0.0
            %v768 = vand.u32 %v762, 2147483648
            %v769 = vsel %vm767, %v768, %v766
            %v770 = vmul.f32 %v769, %v769
            %v771 = vsel %vm756, %v770, 0.0
            %v772 = vrot.slane %v771, 4
            %v773 = vadd.f32 %v771, %v772
            %v774 = vrot.slane %v773, 2
            %v775 = vadd.f32 %v773, %v774
            %v776 = vrot.slane %v775, 1
            %v777 = vadd.f32 %v775, %v776
            %v778 = vrcp.pop 4.0
            %v779 = vmul.f32 %v777, %v778
            %v780 = vadd.f32 %v779, 1e-05
            %v781 = vrsqrt.pop %v780
            %v782 = vmul.f32 %v769, %v781
            %v783 = vxor.u32 %v782, 2147483648
            %v784 = vmul.f32 %v783, 1.442695
            %v785 = vpow.pop %v784
            %v786 = vadd.f32 %v785, 1.0
            %v787 = vrcp.pop %v786
            %v788 = vmul.f32 1.0, %v787
            %789 = vst [vmem:[#allocation10] sm:$0xf] %v788
          $region56: #{tpu_custom_call.1} parent=47 // pred_fallthru
            _
        $region48: #{tpu_custom_call.1} parent=27 // pred_fallthru
          _
        %s790 = sand.u32 %s90, 1
        %s791 = scalar_lea.sflag [#allocation6], %s790
        %s792 = sand.u32 %s90, 1
        %s793 = smul.addr %s792, 16
        %s794 = scalar_lea.vmem [#allocation9], %s793
        // Predicated region
        $region57: #{tpu_custom_call.1} parent=27 // pred_check
          %p795 = pneg %p100
        $region58: #{tpu_custom_call.1} parent=27 // pred_check_branch
          %797 = sbr.rel (%p795) target = $region60
        $region59: #{tpu_custom_call.1} parent=27 // pred_region
          %s798 = smul.u32 %s26, %s25
          %s800 = ssub.s32 256, 256
          %801 = vsyncadd %s791, %s800
          %s802 = smul.addr %s798, 2
          %s803 = smul.addr %s802, 128
          %s804 = scalar_lea.hbm %s2, %s803
          %s806 = sshll.u32 %s794, 4
          %s807 = int_to_ptr.vmem [resolvable:$true] %s806
          %809 = dma.vmem_to_hbm [thread:$0]  %s807, 256, %s804, %s791
        $region60: #{tpu_custom_call.1} parent=27 // pred_fallthru
          _
        // Predicated region
        $region61: #{tpu_custom_call.1} parent=27 // pred_check
          %p810 = pneg %p121
        $region62: #{tpu_custom_call.1} parent=27 // pred_check_branch
          %812 = sbr.rel (%p810) target = $region64
        $region63: #{tpu_custom_call.1} parent=27 // pred_region
          %s814 = ssub.s32 64, 64
          %815 = vsyncadd [#allocation11], %s814
          %s817 = sshll.u32 [#allocation10], 4
          %s818 = int_to_ptr.vmem [resolvable:$true] %s817
          %820 = dma.vmem_to_hbm [thread:$0]  %s818, 64, %s3, [#allocation11]
        $region64: #{tpu_custom_call.1} parent=27 // pred_fallthru
          _
        // Predicated region
        $region65: #{tpu_custom_call.1} parent=27 // pred_check
          %p821 = pneg %p121
        $region66: #{tpu_custom_call.1} parent=27 // pred_check_branch
          %823 = sbr.rel (%p821) target = $region68
        $region67: #{tpu_custom_call.1} parent=27 // pred_region
          %824 = dma.done [#allocation11], 64
        $region68: #{tpu_custom_call.1} parent=27 // pred_fallthru
          _
      $region28: #{tpu_custom_call.1} parent=5 // pred_fallthru
        _
      %p825 = scmp.le.s32.totalorder 2, %s16
      // Predicated region
      $region69: #{tpu_custom_call.1} parent=5 // pred_check
        %p826 = pneg %p825
      $region70: #{tpu_custom_call.1} parent=5 // pred_check_branch
        %828 = sbr.rel (%p826) target = $region72
      $region71: #{tpu_custom_call.1} parent=5 // pred_region
        %s829 = ssub.s32 %s16, 2
        // Predicated region
        $region73: #{tpu_custom_call.1} parent=71 // pred_check
          %p830 = pneg %p106
        $region74: #{tpu_custom_call.1} parent=71 // pred_check_branch
          %832 = sbr.rel (%p830) target = $region76
        $region75: #{tpu_custom_call.1} parent=71 // pred_region
          %s833 = sand.u32 %s91, 1
          %s834 = scalar_lea.sflag [#allocation6], %s833
          %s835 = sand.u32 %s91, 1
          %s836 = smul.addr %s835, 16
          %s837 = scalar_lea.vmem [#allocation9], %s836
          %838 = dma.done %s834, 256
        $region76: #{tpu_custom_call.1} parent=71 // pred_fallthru
          _
      $region72: #{tpu_custom_call.1} parent=5 // pred_fallthru
        _
    $region6: #{tpu_custom_call.1} parent=1 // loop_footer
      %s20 = sadd.s32 1, %s16
    $region7: #{tpu_custom_call.1} parent=1 // loop_footer_branch
      %15 = sbr.rel target = $region3
    $region8: #{tpu_custom_call.1} parent=1 // loop_exit
      _
    %839 = vsyncpa [#allocation5], 1
    %s840 = scalar_lea.sflag [#allocation5], 1
    %841 = vsyncpa %s840, 1
    %842 = vsyncpa [#allocation8], 1
    %843 = vsyncpa [#allocation6], 1
    %s844 = scalar_lea.sflag [#allocation6], 1
    %845 = vsyncpa %s844, 1
    %846 = vsyncpa [#allocation11], 1

</llo_original>
